<compile_context>
chip_gen: v7x
topology: tpu7x:2x2x1
jax: 0.10.0
libtpu: 0.0.40
codegen_flags: <defaults>
</compile_context>

<pallas_src>
import functools

import jax
import jax.numpy as jnp
from jax.experimental import pallas as pl
from jax.experimental.pallas import tpu as pltpu


def _round_up(x, m):
    return ((x + m - 1) // m) * m


def _mlp_kernel(pe_ref, act_ref, w1e_ref, w1a_ref, b1_ref, w2_ref, b2_ref, o_ref):
    # pe_ref : [Bt, embed_dim]   f32 in HBM/VMEM; cast to bf16 here (VPU pack)
    # act_ref: [Bt, action_dim]  f32, tiny lane extent -> VPU tail
    # w1e_ref: [embed_dim, H]    bf16 (pre-cast once)   MXU operand
    # w1a_ref: [action_dim, H]   f32
    # b1_ref : [1, H]            f32
    # w2_ref : [H, d_out]        bf16 (pre-cast once)   MXU operand
    # b2_ref : [1, d_out]        f32
    # o_ref  : [Bt, d_out]

    # First layer: 128-aligned contraction on the MXU, f32 accumulation.
    pe = pe_ref[...].astype(w1e_ref.dtype)          # in-kernel cast, on VMEM
    h = jnp.dot(pe, w1e_ref[...], preferred_element_type=jnp.float32)

    # Action contribution: action_dim is tiny (2), so a static unroll of VPU
    # FMAs in f32 instead of a ragged K = embed_dim + action_dim contraction.
    act = act_ref[...].astype(jnp.float32)
    w1a = w1a_ref[...]
    tail = b1_ref[...]                               # [1, H], broadcasts
    for a in range(act.shape[1]):                    # static, small unroll
        tail = tail + act[:, a:a + 1] * w1a[a:a + 1, :]

    h = jnp.maximum(h + tail, 0.0)                   # bias + ReLU in f32

    # Second layer on the MXU, f32 accumulation, bias add in f32.
    y = jnp.dot(h.astype(w2_ref.dtype), w2_ref[...],
                preferred_element_type=jnp.float32) + b2_ref[...]
    o_ref[...] = y.astype(o_ref.dtype)


def prepare_predictor_params(w1, b1, w2, b2, embed_dim, *, use_bf16=True):
    """One-time weight preprocessing (do NOT call per forward step).

    w1: [embed_dim + action_dim, hidden], b1: [hidden] or [1, hidden]
    w2: [hidden, embed_dim],              b2: [embed_dim] or [1, embed_dim]
    Returns (w1e, w1a, b1_2d, w2c, b2_2d) already split / cast / reshaped.
    """
    mxu = jnp.bfloat16 if use_bf16 else jnp.float32
    hidden = w1.shape[1]
    d_out = w2.shape[1]
    w1e = jnp.asarray(w1[:embed_dim], mxu)             # 128-aligned MXU part
    w1a = jnp.asarray(w1[embed_dim:], jnp.float32)     # tiny VPU tail part
    b1_2d = jnp.asarray(b1, jnp.float32).reshape(1, hidden)
    w2c = jnp.asarray(w2, mxu)
    b2_2d = jnp.asarray(b2, jnp.float32).reshape(1, d_out)
    return (w1e, w1a, b1_2d, w2c, b2_2d)


# Safe on all of v5e (128 MiB phys, 16 MiB scoped default), v6e (128/32),
# v7x (64/32): raises the scoped ceiling without approaching physical VMEM.
_VMEM_LIMIT_BYTES = 48 * 1024 * 1024


def predictor_linear_forward(prev_embed, action, params, *,
                             block_b=512, gridless_max_b=1024,
                             out_dtype=jnp.float32):
    """Pallas implementation of PredictorLinear.forward.

    prev_embed: [B, embed_dim] f32  (the module's stored self.prev_embed)
    action    : [B, action_dim]
    params    : output of prepare_predictor_params (pre-split / pre-cast).
    returns   : [B, embed_dim] (out_dtype; keep f32 to match the torch module,
                 pass bf16 if the consumer re-casts anyway).
    """
    w1e, w1a, b1_2d, w2c, b2_2d = params
    B, embed_dim = prev_embed.shape
    action_dim = action.shape[1]
    hidden = w1e.shape[1]
    d_out = w2c.shape[1]
    assert w1e.shape[0] == embed_dim
    assert w1a.shape == (action_dim, hidden)

    args = (prev_embed, action, w1e, w1a, b1_2d, w2c, b2_2d)

    if B <= gridless_max_b:
        # Single-TensorCore regime (always right on v5e/v6e; raise
        # gridless_max_b there): whole problem resident in VMEM, no grid ->
        # no pipeline prologue/epilogue, no per-step overhead, no
        # double-buffering of the weights.
        in_specs = [pl.BlockSpec(memory_space=pltpu.MemorySpace.VMEM)
                    for _ in range(len(args))]
        return pl.pallas_call(
            _mlp_kernel,
            out_shape=jax.ShapeDtypeStruct((B, d_out), out_dtype),
            in_specs=in_specs,
            out_specs=pl.BlockSpec(memory_space=pltpu.MemorySpace.VMEM),
            compiler_params=pltpu.CompilerParams(
                vmem_limit_bytes=_VMEM_LIMIT_BYTES),
        )(*args)

    # Large batch: tile B with a "parallel" axis (megacore / v7x dual-TC batch
    # split) and guarantee >= 4 blocks so each core gets >= 2 blocks and DMAs
    # pipeline behind the MXU work.  Ragged last block is handled by Pallas
    # (boundary output writes are masked) -- no pad / slice round trips.
    bb = min(block_b, _round_up(pl.cdiv(B, 4), 8))
    bb = max(bb, 8)
    nb = pl.cdiv(B, bb)

    # Weights/biases are full-extent constant-index blocks; Mosaic's revisit
    # detection fetches them once (pipeline_mode=pl.Buffered(1) would make
    # that explicit but is not required for correctness).
    return pl.pallas_call(
        _mlp_kernel,
        out_shape=jax.ShapeDtypeStruct((B, d_out), out_dtype),
        grid=(nb,),
        in_specs=[
            pl.BlockSpec((bb, embed_dim), lambda i: (i, 0)),
            pl.BlockSpec((bb, action_dim), lambda i: (i, 0)),
            pl.BlockSpec((embed_dim, hidden), lambda i: (0, 0)),
            pl.BlockSpec((action_dim, hidden), lambda i: (0, 0)),
            pl.BlockSpec((1, hidden), lambda i: (0, 0)),
            pl.BlockSpec((hidden, d_out), lambda i: (0, 0)),
            pl.BlockSpec((1, d_out), lambda i: (0, 0)),
        ],
        out_specs=pl.BlockSpec((bb, d_out), lambda i: (i, 0)),
        compiler_params=pltpu.CompilerParams(
            dimension_semantics=("parallel",),
            vmem_limit_bytes=_VMEM_LIMIT_BYTES),
    )(*args)


def _reference(prev_embed, action, w1, b1, w2, b2, use_bf16=True):
    """Pure-JAX reference with the same mixed-precision policy as the kernel."""
    mxu = jnp.bfloat16 if use_bf16 else jnp.float32
    embed_dim = prev_embed.shape[1]
    pe = prev_embed.astype(mxu)
    w1e = w1[:embed_dim].astype(mxu)
    w1a = w1[embed_dim:].astype(jnp.float32)
    h = jnp.dot(pe, w1e, preferred_element_type=jnp.float32)
    h = h + action.astype(jnp.float32) @ w1a + b1.reshape(1, -1)
    h = jnp.maximum(h, 0.0)
    y = jnp.dot(h.astype(mxu), w2.astype(mxu),
                preferred_element_type=jnp.float32)
    return y + b2.reshape(1, -1)


def _init_linear(key, fan_in, fan_out):
    # Mimic torch.nn.Linear default init: U(-1/sqrt(fan_in), 1/sqrt(fan_in)).
    # Stored as [fan_in, fan_out] so forward is x @ W (PyTorch stores W.T).
    kw, kb = jax.random.split(key)
    bound = 1.0 / jnp.sqrt(fan_in)
    w = jax.random.uniform(kw, (fan_in, fan_out), jnp.float32, -bound, bound)
    b = jax.random.uniform(kb, (1, fan_out), jnp.float32, -bound, bound)
    return w, b


if __name__ == "__main__":
    # Small shapes consistent with the module's forward (defaults scaled down).
    batch, embed_dim, hidden_dim, action_dim = 8, 128, 256, 2

    key = jax.random.PRNGKey(0)
    k_embed, k_act, k_l1, k_l2, k_big_e, k_big_a = jax.random.split(key, 6)

    w1, b1 = _init_linear(k_l1, embed_dim + action_dim, hidden_dim)
    w2, b2 = _init_linear(k_l2, hidden_dim, embed_dim)

    # One-time weight preparation, hoisted out of the per-step path.
    params = jax.block_until_ready(
        prepare_predictor_params(w1, b1, w2, b2, embed_dim))

    # --- Small-batch (gridless, single-shot) path -----------------------------
    fwd_small = jax.jit(predictor_linear_forward)
    prev_embed = jax.random.normal(k_embed, (batch, embed_dim), jnp.float32)
    action = jax.random.normal(k_act, (batch, action_dim), jnp.float32)

    out_small = jax.block_until_ready(fwd_small(prev_embed, action, params))
    ref_small = _reference(prev_embed, action, w1, b1, w2, b2)
    assert out_small.shape == (batch, embed_dim)
    assert jnp.allclose(out_small, ref_small, atol=1e-2, rtol=1e-2)

    # --- Large-batch (B-tiled grid, ragged last block, no pad/slice) ----------
    big_b = 520  # not a multiple of block_b -> exercises masked boundary block
    fwd_big = jax.jit(functools.partial(predictor_linear_forward,
                                        block_b=128, gridless_max_b=256))
    prev_embed_b = jax.random.normal(k_big_e, (big_b, embed_dim), jnp.float32)
    action_b = jax.random.normal(k_big_a, (big_b, action_dim), jnp.float32)

    out_big = jax.block_until_ready(fwd_big(prev_embed_b, action_b, params))
    ref_big = _reference(prev_embed_b, action_b, w1, b1, w2, b2)
    assert out_big.shape == (big_b, embed_dim)
    assert jnp.allclose(out_big, ref_big, atol=1e-2, rtol=1e-2)

    print("KERNEL_OK")
</pallas_src>

<mosaic_0001>
module attributes {stable_mosaic.version = 11 : i64} {
  func.func @_mlp_kernel(%arg0: memref<8x128xf32, #tpu.memory_space<vmem>>, %arg1: memref<8x2xf32, #tpu.memory_space<vmem>>, %arg2: memref<128x256xbf16, #tpu.memory_space<vmem>>, %arg3: memref<2x256xf32, #tpu.memory_space<vmem>>, %arg4: memref<1x256xf32, #tpu.memory_space<vmem>>, %arg5: memref<256x128xbf16, #tpu.memory_space<vmem>>, %arg6: memref<1x128xf32, #tpu.memory_space<vmem>>, %arg7: memref<8x128xf32, #tpu.memory_space<vmem>>) attributes {dimension_semantics = [], scalar_prefetch = 0 : i64, scratch_operands = 0 : i64, tpu.core_type = #tpu.core_type<tc>} {
    %c0 = arith.constant 0 : index
    %c0_0 = arith.constant 0 : index
    %0 = vector.load %arg0[%c0, %c0_0] : memref<8x128xf32, #tpu.memory_space<vmem>>, vector<8x128xf32>
    %1 = arith.truncf %0 : vector<8x128xf32> to vector<8x128xbf16>
    %c0_1 = arith.constant 0 : index
    %c0_2 = arith.constant 0 : index
    %2 = vector.load %arg2[%c0_1, %c0_2] : memref<128x256xbf16, #tpu.memory_space<vmem>>, vector<128x256xbf16>
    %cst = arith.constant dense<0.000000e+00> : vector<8x256xf32>
    %3 = tpu.matmul %1, %2, %cst {dimension_numbers = #tpu.dot_dimension_numbers<[1], [0], [0], [1], [0, 0, 1, 1], [], []>} : vector<8x128xbf16>, vector<128x256xbf16>, vector<8x256xf32> -> vector<8x256xf32>
    %c0_3 = arith.constant 0 : index
    %c0_4 = arith.constant 0 : index
    %4 = vector.load %arg1[%c0_3, %c0_4] : memref<8x2xf32, #tpu.memory_space<vmem>>, vector<8x2xf32>
    %c0_5 = arith.constant 0 : index
    %c0_6 = arith.constant 0 : index
    %5 = vector.load %arg3[%c0_5, %c0_6] : memref<2x256xf32, #tpu.memory_space<vmem>>, vector<2x256xf32>
    %c0_7 = arith.constant 0 : index
    %c0_8 = arith.constant 0 : index
    %6 = vector.load %arg4[%c0_7, %c0_8] : memref<1x256xf32, #tpu.memory_space<vmem>>, vector<1x256xf32>
    %7 = vector.extract_strided_slice %4 {offsets = [0, 0], sizes = [8, 1], strides = [1, 1]} : vector<8x2xf32> to vector<8x1xf32>
    %8 = vector.extract_strided_slice %5 {offsets = [0, 0], sizes = [1, 256], strides = [1, 1]} : vector<2x256xf32> to vector<1x256xf32>
    %9 = vector.broadcast %7 : vector<8x1xf32> to vector<8x256xf32>
    %10 = vector.broadcast %8 : vector<1x256xf32> to vector<8x256xf32>
    %11 = arith.mulf %9, %10 : vector<8x256xf32>
    %12 = vector.broadcast %6 : vector<1x256xf32> to vector<8x256xf32>
    %13 = arith.addf %12, %11 : vector<8x256xf32>
    %14 = vector.extract_strided_slice %4 {offsets = [0, 1], sizes = [8, 1], strides = [1, 1]} : vector<8x2xf32> to vector<8x1xf32>
    %15 = vector.extract_strided_slice %5 {offsets = [1, 0], sizes = [1, 256], strides = [1, 1]} : vector<2x256xf32> to vector<1x256xf32>
    %16 = vector.broadcast %14 : vector<8x1xf32> to vector<8x256xf32>
    %17 = vector.broadcast %15 : vector<1x256xf32> to vector<8x256xf32>
    %18 = arith.mulf %16, %17 : vector<8x256xf32>
    %19 = arith.addf %13, %18 : vector<8x256xf32>
    %20 = arith.addf %3, %19 : vector<8x256xf32>
    %cst_9 = arith.constant 0.000000e+00 : f32
    %21 = vector.broadcast %cst_9 : f32 to vector<8x256xf32>
    %22 = arith.maximumf %20, %21 : vector<8x256xf32>
    %23 = arith.truncf %22 : vector<8x256xf32> to vector<8x256xbf16>
    %c0_10 = arith.constant 0 : index
    %c0_11 = arith.constant 0 : index
    %24 = vector.load %arg5[%c0_10, %c0_11] : memref<256x128xbf16, #tpu.memory_space<vmem>>, vector<256x128xbf16>
    %cst_12 = arith.constant dense<0.000000e+00> : vector<8x128xf32>
    %25 = tpu.matmul %23, %24, %cst_12 {dimension_numbers = #tpu.dot_dimension_numbers<[1], [0], [0], [1], [0, 0, 1, 1], [], []>} : vector<8x256xbf16>, vector<256x128xbf16>, vector<8x128xf32> -> vector<8x128xf32>
    %c0_13 = arith.constant 0 : index
    %c0_14 = arith.constant 0 : index
    %26 = vector.load %arg6[%c0_13, %c0_14] : memref<1x128xf32, #tpu.memory_space<vmem>>, vector<1x128xf32>
    %27 = vector.broadcast %26 : vector<1x128xf32> to vector<8x128xf32>
    %28 = arith.addf %25, %27 : vector<8x128xf32>
    %c0_15 = arith.constant 0 : index
    %c0_16 = arith.constant 0 : index
    %29 = vector.load %arg7[%c0_15, %c0_16] : memref<8x128xf32, #tpu.memory_space<vmem>>, vector<8x128xf32>
    tpu.vector_store %arg7[%c0_15, %c0_16], %28 {strides = array<i32>} : memref<8x128xf32, #tpu.memory_space<vmem>>, vector<8x128xf32>,
    return
  }
}

</mosaic_0001>

<llo_original>
// kernel: predictor_linear_forward.1
$region0: #{predictor_linear_forward.1}
  #allocation0 [shape = 'u32[]', space=smem, size = 0x4, offset = 0x4, fixed_abs, tag = 'smem constant byte address 0x4 - core index']
  #allocation1 [shape = 'u32[144,128]{1,0:T(1,128)}', space=vmem, size = 0x12000, scoped, tag = 'internal scratch']
  %s0 = inlined_call_operand.vmem [shape: f32[8,128], index: 0, kind: input, shape index: {}]
  %s1 = inlined_call_operand.vmem [shape: f32[8,2], index: 1, kind: input, shape index: {}]
  %s2 = inlined_call_operand.hbm [shape: bf16[128,256], index: 2, kind: input, shape index: {}]
  %s3 = inlined_call_operand.vmem [shape: f32[2,256], index: 3, kind: input, shape index: {}]
  %s4 = inlined_call_operand.vmem [shape: f32[1,256], index: 4, kind: input, shape index: {}]
  %s5 = inlined_call_operand.hbm [shape: bf16[256,128], index: 5, kind: input, shape index: {}]
  %s6 = inlined_call_operand.vmem [shape: f32[1,128], index: 6, kind: input, shape index: {}]
  %s7 = inlined_call_operand.hbm [shape: f32[8,128], index: 7, kind: output, shape index: {}]
  %s8 = sld [smem:[#allocation0]]
  $region46: #{predictor_linear_forward.1} parent=0
    _
  %s10 = ssub.s32 1, %s8
  %s11 = scalar_select 0, %s10, %s8
  $region1: #{predictor_linear_forward.1} parent=0
    #allocation2 [shape = 'u8[65536]{0}', space=vmem, size = 0x10000, scoped, tag = 'input window, operand 2, single buffered']
    #allocation3 [shape = 's32[1]{0}', space=sflag, size = 0x4, scoped, tag = 'scoped memory for predictor_linear_forward.1']
    #allocation4 [shape = 's32[1]{0}', space=sflag, size = 0x4, scoped, tag = 'scoped memory for predictor_linear_forward.1']
    #allocation5 [shape = 'u8[65536]{0}', space=vmem, size = 0x10000, scoped, tag = 'input window, operand 5, single buffered']
    #allocation6 [shape = 's32[1]{0}', space=sflag, size = 0x4, scoped, tag = 'scoped memory for predictor_linear_forward.1']
    #allocation7 [shape = 'u8[4096]{0}', space=vmem, size = 0x1000, scoped, tag = 'output window, operand 0, single buffered']
    %12 = vsyncpa [#allocation3], 0
    %13 = vsyncpa [#allocation6], 0
    %14 = vsyncpa [#allocation4], 0
    // Predicated region
    $region2: #{predictor_linear_forward.1} parent=1 // pred_check
      _
    $region3: #{predictor_linear_forward.1} parent=1 // pred_check_branch
      %16 = sbr.rel (0) target = $region5
    $region4: #{predictor_linear_forward.1} parent=1 // pred_region
      _
    $region5: #{predictor_linear_forward.1} parent=1 // pred_fallthru
      _
    // Predicated region
    $region6: #{predictor_linear_forward.1} parent=1 // pred_check
      _
    $region7: #{predictor_linear_forward.1} parent=1 // pred_check_branch
      %18 = sbr.rel (0) target = $region9
    $region8: #{predictor_linear_forward.1} parent=1 // pred_region
      _
    $region9: #{predictor_linear_forward.1} parent=1 // pred_fallthru
      _
    // Predicated region
    $region10: #{predictor_linear_forward.1} parent=1 // pred_check
      _
    $region11: #{predictor_linear_forward.1} parent=1 // pred_check_branch
      %20 = sbr.rel (0) target = $region13
    $region12: #{predictor_linear_forward.1} parent=1 // pred_region
      %s22 = ssub.s32 2048, 2048
      %23 = vsyncadd [#allocation3], %s22
      %s24 = sshll.u32 [#allocation2], 4
      %s25 = int_to_ptr.vmem [resolvable:$true] %s24
      %30 = dma.hbm_to_vmem [thread:$0]  %s2, 2048, %s25, [#allocation3], 128, 128, 8
    $region13: #{predictor_linear_forward.1} parent=1 // pred_fallthru
      _
    // Predicated region
    $region14: #{predictor_linear_forward.1} parent=1 // pred_check
      _
    $region15: #{predictor_linear_forward.1} parent=1 // pred_check_branch
      %32 = sbr.rel (0) target = $region17
    $region16: #{predictor_linear_forward.1} parent=1 // pred_region
      _
    $region17: #{predictor_linear_forward.1} parent=1 // pred_fallthru
      _
    // Predicated region
    $region18: #{predictor_linear_forward.1} parent=1 // pred_check
      _
    $region19: #{predictor_linear_forward.1} parent=1 // pred_check_branch
      %34 = sbr.rel (0) target = $region21
    $region20: #{predictor_linear_forward.1} parent=1 // pred_region
      _
    $region21: #{predictor_linear_forward.1} parent=1 // pred_fallthru
      _
    // Predicated region
    $region22: #{predictor_linear_forward.1} parent=1 // pred_check
      _
    $region23: #{predictor_linear_forward.1} parent=1 // pred_check_branch
      %36 = sbr.rel (0) target = $region25
    $region24: #{predictor_linear_forward.1} parent=1 // pred_region
      %s38 = ssub.s32 2048, 2048
      %39 = vsyncadd [#allocation6], %s38
      %s40 = sshll.u32 [#allocation5], 4
      %s41 = int_to_ptr.vmem [resolvable:$true] %s40
      %46 = dma.hbm_to_vmem [thread:$0]  %s5, 2048, %s41, [#allocation6], 64, 64, 4
    $region25: #{predictor_linear_forward.1} parent=1 // pred_fallthru
      _
    // Predicated region
    $region26: #{predictor_linear_forward.1} parent=1 // pred_check
      _
    $region27: #{predictor_linear_forward.1} parent=1 // pred_check_branch
      %48 = sbr.rel (0) target = $region29
    $region28: #{predictor_linear_forward.1} parent=1 // pred_region
      _
    $region29: #{predictor_linear_forward.1} parent=1 // pred_fallthru
      _
    // Predicated region
    $region30: #{predictor_linear_forward.1} parent=1 // pred_check
      _
    $region31: #{predictor_linear_forward.1} parent=1 // pred_check_branch
      %50 = sbr.rel (0) target = $region33
    $region32: #{predictor_linear_forward.1} parent=1 // pred_region
      %51 = dma.done [#allocation3], 2048
    $region33: #{predictor_linear_forward.1} parent=1 // pred_fallthru
      _
    // Predicated region
    $region34: #{predictor_linear_forward.1} parent=1 // pred_check
      _
    $region35: #{predictor_linear_forward.1} parent=1 // pred_check_branch
      %53 = sbr.rel (0) target = $region37
    $region36: #{predictor_linear_forward.1} parent=1 // pred_region
      %54 = dma.done [#allocation6], 2048
    $region37: #{predictor_linear_forward.1} parent=1 // pred_fallthru
      _
    %v56 = vld [vmem:[%s0] sm:$0xff]
    %v57 = vpack.c.bf16 %v56, %v56
    %v58 = vld [vmem:[#allocation2] sm:$0xff]
    %v59 = vld [vmem:[#allocation2 + $0x8] sm:$0xff]
    %v60 = vld [vmem:[#allocation2 + $0x10] sm:$0xff]
    %v61 = vld [vmem:[#allocation2 + $0x18] sm:$0xff]
    %v62 = vld [vmem:[#allocation2 + $0x20] sm:$0xff]
    %v63 = vld [vmem:[#allocation2 + $0x28] sm:$0xff]
    %v64 = vld [vmem:[#allocation2 + $0x30] sm:$0xff]
    %v65 = vld [vmem:[#allocation2 + $0x38] sm:$0xff]
    %v66 = vld [vmem:[#allocation2 + $0x40] sm:$0xff]
    %v67 = vld [vmem:[#allocation2 + $0x48] sm:$0xff]
    %v68 = vld [vmem:[#allocation2 + $0x50] sm:$0xff]
    %v69 = vld [vmem:[#allocation2 + $0x58] sm:$0xff]
    %v70 = vld [vmem:[#allocation2 + $0x60] sm:$0xff]
    %v71 = vld [vmem:[#allocation2 + $0x68] sm:$0xff]
    %v72 = vld [vmem:[#allocation2 + $0x70] sm:$0xff]
    %v73 = vld [vmem:[#allocation2 + $0x78] sm:$0xff]
    %v74 = vld [vmem:[%s1] sm:$0xff]
    %v75 = vld [vmem:[%s3] sm:$0xf]
    %v76 = vld [vmem:[%s4] sm:$0x3]
    %78 = vset.pattern.permute.xlu0 0
    %79 = vperm.xlu0 %78, %v74
    %v80 = vpop.permute.xlu0 %79
    %v83 = vlaneseq
    %v84 = vshrl.u32 %v83, 7
    %v85 = vsub.s32 0, %v84
    %v86 = vrot.slane %v75, %v85
    %v87 = vlaneseq
    %v88 = vshrl.u32 %v87, 7
    %v89 = vsub.s32 2, %v88
    %v90 = vrot.slane %v75, %v89
    %v93 = vlaneseq
    %v94 = vshrl.u32 %v93, 7
    %v95 = vsub.s32 0, %v94
    %v96 = vrot.slane %v86, %v95
    %v97 = vlaneseq
    %v98 = vshrl.u32 %v97, 7
    %v99 = vsub.s32 0, %v98
    %v100 = vrot.slane %v90, %v99
    %v101 = vmul.f32 %v80, %v96
    %v102 = vmul.f32 %v80, %v100
    %v104 = vlaneseq
    %v105 = vshrl.u32 %v104, 7
    %v106 = vsub.s32 0, %v105
    %v107 = vrot.slane %v76, %v106
    %v108 = vlaneseq
    %v109 = vshrl.u32 %v108, 7
    %v110 = vsub.s32 1, %v109
    %v111 = vrot.slane %v76, %v110
    %v114 = vadd.f32 %v107, %v101
    %v115 = vadd.f32 %v111, %v102
    %116 = vset.pattern.permute.xlu0 1
    %117 = vperm.xlu0 %116, %v74
    %v118 = vpop.permute.xlu0 %117
    %v120 = vlaneseq
    %v121 = vshrl.u32 %v120, 7
    %v122 = vsub.s32 1, %v121
    %v123 = vrot.slane %v75, %v122
    %v124 = vlaneseq
    %v125 = vshrl.u32 %v124, 7
    %v126 = vsub.s32 3, %v125
    %v127 = vrot.slane %v75, %v126
    %v130 = vlaneseq
    %v131 = vshrl.u32 %v130, 7
    %v132 = vsub.s32 1, %v131
    %v133 = vrot.slane %v123, %v132
    %v134 = vlaneseq
    %v135 = vshrl.u32 %v134, 7
    %v136 = vsub.s32 1, %v135
    %v137 = vrot.slane %v127, %v136
    %v138 = vmul.f32 %v118, %v133
    %v139 = vmul.f32 %v118, %v137
    %v140 = vadd.f32 %v114, %v138
    %v141 = vadd.f32 %v115, %v139
    %v158 = vunpack.c.l.b16 %v58
    %v159 = vunpack.c.h.b16 %v58
    %v160 = vunpack.c.l.b16 %v59
    %v161 = vunpack.c.h.b16 %v59
    %v162 = vunpack.c.l.b16 %v60
    %v163 = vunpack.c.h.b16 %v60
    %v164 = vunpack.c.l.b16 %v61
    %v165 = vunpack.c.h.b16 %v61
    %v166 = vunpack.c.l.b16 %v62
    %v167 = vunpack.c.h.b16 %v62
    %v168 = vunpack.c.l.b16 %v63
    %v169 = vunpack.c.h.b16 %v63
    %v170 = vunpack.c.l.b16 %v64
    %v171 = vunpack.c.h.b16 %v64
    %v172 = vunpack.c.l.b16 %v65
    %v173 = vunpack.c.h.b16 %v65
    %v174 = vunpack.c.l.b16 %v66
    %v175 = vunpack.c.h.b16 %v66
    %v176 = vunpack.c.l.b16 %v67
    %v177 = vunpack.c.h.b16 %v67
    %v178 = vunpack.c.l.b16 %v68
    %v179 = vunpack.c.h.b16 %v68
    %v180 = vunpack.c.l.b16 %v69
    %v181 = vunpack.c.h.b16 %v69
    %v182 = vunpack.c.l.b16 %v70
    %v183 = vunpack.c.h.b16 %v70
    %v184 = vunpack.c.l.b16 %v71
    %v185 = vunpack.c.h.b16 %v71
    %v186 = vunpack.c.l.b16 %v72
    %v187 = vunpack.c.h.b16 %v72
    %v188 = vunpack.c.l.b16 %v73
    %v189 = vunpack.c.h.b16 %v73
    %v190 = vpack.c.b16 %v160, %v158
    %v191 = vpack.c.b16 %v161, %v159
    %v192 = vpack.c.b16 %v164, %v162
    %v193 = vpack.c.b16 %v165, %v163
    %v194 = vpack.c.b16 %v168, %v166
    %v195 = vpack.c.b16 %v169, %v167
    %v196 = vpack.c.b16 %v172, %v170
    %v197 = vpack.c.b16 %v173, %v171
    %v198 = vpack.c.b16 %v176, %v174
    %v199 = vpack.c.b16 %v177, %v175
    %v200 = vpack.c.b16 %v180, %v178
    %v201 = vpack.c.b16 %v181, %v179
    %v202 = vpack.c.b16 %v184, %v182
    %v203 = vpack.c.b16 %v185, %v183
    %v204 = vpack.c.b16 %v188, %v186
    %v205 = vpack.c.b16 %v189, %v187
    %222 = vmatprep.subr.bf16.mxu0 %v191
    %223 = vmatpush1.bf16.msra.mxu0 %v190
    %224 = vmatprep.subr.bf16.mxu0 %v193
    %225 = vmatpush1.bf16.msra.mxu0 %v192
    %226 = vmatprep.subr.bf16.mxu0 %v195
    %227 = vmatpush1.bf16.msra.mxu0 %v194
    %228 = vmatprep.subr.bf16.mxu0 %v197
    %229 = vmatpush1.bf16.msra.mxu0 %v196
    %230 = vmatprep.subr.bf16.mxu0 %v199
    %231 = vmatpush1.bf16.msra.mxu0 %v198
    %232 = vmatprep.subr.bf16.mxu0 %v201
    %233 = vmatpush1.bf16.msra.mxu0 %v200
    %234 = vmatprep.subr.bf16.mxu0 %v203
    %235 = vmatpush1.bf16.msra.mxu0 %v202
    %236 = vmatprep.subr.bf16.mxu0 %v205
    %237 = vmatpush1.bf16.msra.mxu0 %v204
    %238 = vmatprep.subr.bf16.mxu0 0
    %239 = vmatpush1.bf16.msra.mxu0 0
    %240 = vmatprep.subr.bf16.mxu0 0
    %241 = vmatpush1.bf16.msra.mxu0 0
    %242 = vmatprep.subr.bf16.mxu0 0
    %243 = vmatpush1.bf16.msra.mxu0 0
    %244 = vmatprep.subr.bf16.mxu0 0
    %245 = vmatpush1.bf16.msra.mxu0 0
    %246 = vmatprep.subr.bf16.mxu0 0
    %247 = vmatpush1.bf16.msra.mxu0 0
    %248 = vmatprep.subr.bf16.mxu0 0
    %249 = vmatpush1.bf16.msra.mxu0 0
    %250 = vmatprep.subr.bf16.mxu0 0
    %251 = vmatpush1.bf16.msra.mxu0 0
    %252 = vmatprep.subr.bf16.mxu0 0
    %253 = vmatpush1.bf16.msra.mxu0 0
    %254 = vmatprep.mubr.bf16.mxu0 0
    %255 = vmatmul.mubr.bf16.gmra.mrb[0].mxu0 %v57
    %v256 = vpop.f32.mrb[0].mxu0
    %v257 = vadd.f32 %v140, %v256
    %v258 = vpop.f32.mrb[0].mxu0
    %v259 = vadd.f32 %v141, %v258
    %v260 = vpop.f32.mrb[0].mxu0
    %v261 = vpop.f32.mrb[0].mxu0
    %262 = vdwg.mxu0
    %v263 = vmax.f32 %v257, 0.0
    %v264 = vmax.f32 %v259, 0.0
    %v265 = vpack.c.bf16 %v263, %v263
    %v266 = vpack.c.bf16 %v264, %v264
    %v267 = vld [vmem:[#allocation5] sm:$0xf]
    %v268 = vld [vmem:[#allocation5 + $0x4] sm:$0xf]
    %v269 = vld [vmem:[#allocation5 + $0x8] sm:$0xf]
    %v270 = vld [vmem:[#allocation5 + $0xc] sm:$0xf]
    %v271 = vld [vmem:[#allocation5 + $0x10] sm:$0xf]
    %v272 = vld [vmem:[#allocation5 + $0x14] sm:$0xf]
    %v273 = vld [vmem:[#allocation5 + $0x18] sm:$0xf]
    %v274 = vld [vmem:[#allocation5 + $0x1c] sm:$0xf]
    %v275 = vld [vmem:[#allocation5 + $0x20] sm:$0xf]
    %v276 = vld [vmem:[#allocation5 + $0x24] sm:$0xf]
    %v277 = vld [vmem:[#allocation5 + $0x28] sm:$0xf]
    %v278 = vld [vmem:[#allocation5 + $0x2c] sm:$0xf]
    %v279 = vld [vmem:[#allocation5 + $0x30] sm:$0xf]
    %v280 = vld [vmem:[#allocation5 + $0x34] sm:$0xf]
    %v281 = vld [vmem:[#allocation5 + $0x38] sm:$0xf]
    %v282 = vld [vmem:[#allocation5 + $0x3c] sm:$0xf]
    %v283 = vld [vmem:[#allocation5 + $0x40] sm:$0xf]
    %v284 = vld [vmem:[#allocation5 + $0x44] sm:$0xf]
    %v285 = vld [vmem:[#allocation5 + $0x48] sm:$0xf]
    %v286 = vld [vmem:[#allocation5 + $0x4c] sm:$0xf]
    %v287 = vld [vmem:[#allocation5 + $0x50] sm:$0xf]
    %v288 = vld [vmem:[#allocation5 + $0x54] sm:$0xf]
    %v289 = vld [vmem:[#allocation5 + $0x58] sm:$0xf]
    %v290 = vld [vmem:[#allocation5 + $0x5c] sm:$0xf]
    %v291 = vld [vmem:[#allocation5 + $0x60] sm:$0xf]
    %v292 = vld [vmem:[#allocation5 + $0x64] sm:$0xf]
    %v293 = vld [vmem:[#allocation5 + $0x68] sm:$0xf]
    %v294 = vld [vmem:[#allocation5 + $0x6c] sm:$0xf]
    %v295 = vld [vmem:[#allocation5 + $0x70] sm:$0xf]
    %v296 = vld [vmem:[#allocation5 + $0x74] sm:$0xf]
    %v297 = vld [vmem:[#allocation5 + $0x78] sm:$0xf]
    %v298 = vld [vmem:[#allocation5 + $0x7c] sm:$0xf]
    %v299 = vld [vmem:[%s6] sm:$0x1]
    %v301 = vlaneseq
    %v302 = vshrl.u32 %v301, 7
    %v303 = vsub.s32 0, %v302
    %v304 = vrot.slane %v299, %v303
    %v338 = vunpack.c.l.b16 %v267
    %v339 = vunpack.c.l.b16 %v268
    %v340 = vunpack.c.l.b16 %v269
    %v341 = vunpack.c.l.b16 %v270
    %v342 = vunpack.c.l.b16 %v271
    %v343 = vunpack.c.l.b16 %v272
    %v344 = vunpack.c.l.b16 %v273
    %v345 = vunpack.c.l.b16 %v274
    %v346 = vunpack.c.l.b16 %v275
    %v347 = vunpack.c.l.b16 %v276
    %v348 = vunpack.c.l.b16 %v277
    %v349 = vunpack.c.l.b16 %v278
    %v350 = vunpack.c.l.b16 %v279
    %v351 = vunpack.c.l.b16 %v280
    %v352 = vunpack.c.l.b16 %v281
    %v353 = vunpack.c.l.b16 %v282
    %v354 = vunpack.c.l.b16 %v283
    %v355 = vunpack.c.l.b16 %v284
    %v356 = vunpack.c.l.b16 %v285
    %v357 = vunpack.c.l.b16 %v286
    %v358 = vunpack.c.l.b16 %v287
    %v359 = vunpack.c.l.b16 %v288
    %v360 = vunpack.c.l.b16 %v289
    %v361 = vunpack.c.l.b16 %v290
    %v362 = vunpack.c.l.b16 %v291
    %v363 = vunpack.c.l.b16 %v292
    %v364 = vunpack.c.l.b16 %v293
    %v365 = vunpack.c.l.b16 %v294
    %v366 = vunpack.c.l.b16 %v295
    %v367 = vunpack.c.l.b16 %v296
    %v368 = vunpack.c.l.b16 %v297
    %v369 = vunpack.c.l.b16 %v298
    %v370 = vpack.c.b16 %v339, %v338
    %v371 = vpack.c.b16 %v341, %v340
    %v372 = vpack.c.b16 %v343, %v342
    %v373 = vpack.c.b16 %v345, %v344
    %v374 = vpack.c.b16 %v347, %v346
    %v375 = vpack.c.b16 %v349, %v348
    %v376 = vpack.c.b16 %v351, %v350
    %v377 = vpack.c.b16 %v353, %v352
    %v378 = vpack.c.b16 %v355, %v354
    %v379 = vpack.c.b16 %v357, %v356
    %v380 = vpack.c.b16 %v359, %v358
    %v381 = vpack.c.b16 %v361, %v360
    %v382 = vpack.c.b16 %v363, %v362
    %v383 = vpack.c.b16 %v365, %v364
    %v384 = vpack.c.b16 %v367, %v366
    %v385 = vpack.c.b16 %v369, %v368
    %402 = vmatprep.subr.bf16.mxu0 0
    %403 = vmatpush1.bf16.msra.mxu0 %v370
    %404 = vmatprep.subr.bf16.mxu0 0
    %405 = vmatpush1.bf16.msra.mxu0 %v371
    %406 = vmatprep.subr.bf16.mxu0 0
    %407 = vmatpush1.bf16.msra.mxu0 %v372
    %408 = vmatprep.subr.bf16.mxu0 0
    %409 = vmatpush1.bf16.msra.mxu0 %v373
    %410 = vmatprep.subr.bf16.mxu0 0
    %411 = vmatpush1.bf16.msra.mxu0 %v374
    %412 = vmatprep.subr.bf16.mxu0 0
    %413 = vmatpush1.bf16.msra.mxu0 %v375
    %414 = vmatprep.subr.bf16.mxu0 0
    %415 = vmatpush1.bf16.msra.mxu0 %v376
    %416 = vmatprep.subr.bf16.mxu0 0
    %417 = vmatpush1.bf16.msra.mxu0 %v377
    %418 = vmatprep.subr.bf16.mxu0 0
    %419 = vmatpush1.bf16.msra.mxu0 %v378
    %420 = vmatprep.subr.bf16.mxu0 0
    %421 = vmatpush1.bf16.msra.mxu0 %v379
    %422 = vmatprep.subr.bf16.mxu0 0
    %423 = vmatpush1.bf16.msra.mxu0 %v380
    %424 = vmatprep.subr.bf16.mxu0 0
    %425 = vmatpush1.bf16.msra.mxu0 %v381
    %426 = vmatprep.subr.bf16.mxu0 0
    %427 = vmatpush1.bf16.msra.mxu0 %v382
    %428 = vmatprep.subr.bf16.mxu0 0
    %429 = vmatpush1.bf16.msra.mxu0 %v383
    %430 = vmatprep.subr.bf16.mxu0 0
    %431 = vmatpush1.bf16.msra.mxu0 %v384
    %432 = vmatprep.subr.bf16.mxu0 0
    %433 = vmatpush1.bf16.msra.mxu0 %v385
    %434 = vmatprep.mubr.bf16.mxu0 %v266
    %435 = vmatmul.mubr.bf16.gmra.mrb[0].mxu0 %v265
    %v436 = vpop.f32.mrb[0].mxu0
    %v437 = vadd.f32 %v304, %v436
    %v438 = vpop.f32.mrb[0].mxu0
    %v439 = vpop.f32.mrb[0].mxu0
    %v440 = vpop.f32.mrb[0].mxu0
    %441 = vdwg.mxu0
    %442 = vst [vmem:[#allocation7] sm:$0xff] %v437
    // Predicated region
    $region38: #{predictor_linear_forward.1} parent=1 // pred_check
      _
    $region39: #{predictor_linear_forward.1} parent=1 // pred_check_branch
      %444 = sbr.rel (0) target = $region41
    $region40: #{predictor_linear_forward.1} parent=1 // pred_region
      %s446 = ssub.s32 128, 128
      %447 = vsyncadd [#allocation4], %s446
      %s449 = sshll.u32 [#allocation7], 4
      %s450 = int_to_ptr.vmem [resolvable:$true] %s449
      %452 = dma.vmem_to_hbm [thread:$0]  %s450, 128, %s7, [#allocation4]
    $region41: #{predictor_linear_forward.1} parent=1 // pred_fallthru
      _
    // Predicated region
    $region42: #{predictor_linear_forward.1} parent=1 // pred_check
      _
    $region43: #{predictor_linear_forward.1} parent=1 // pred_check_branch
      %454 = sbr.rel (0) target = $region45
    $region44: #{predictor_linear_forward.1} parent=1 // pred_region
      %455 = dma.done [#allocation4], 128
    $region45: #{predictor_linear_forward.1} parent=1 // pred_fallthru
      _
    %456 = vsyncpa [#allocation3], 1
    %457 = vsyncpa [#allocation6], 1
    %458 = vsyncpa [#allocation4], 1

</llo_original>
